<compile_context>
chip_gen: v6e
topology: v6e:2x2x1
jax: 0.10.0
libtpu: 0.0.40
codegen_flags: <defaults>
</compile_context>

<pallas_src>
import jax
import jax.numpy as jnp
from jax.experimental import pallas as pl
from jax.experimental.pallas import tpu as pltpu


def _round_up(x: int, m: int) -> int:
    return (x + m - 1) // m * m


def _vmem_capacity_bytes() -> int:
    """Per-TensorCore VMEM capacity; conservative fallback if unqueryable."""
    try:
        info = pltpu.get_tpu_info()
        cap = getattr(info, "vmem_capacity_bytes", None)
        if cap:
            return int(cap)
    except Exception:
        pass
    return 64 * 1024 * 1024  # v7x per-TC size: safe lower bound everywhere.


def _make_kernel(has_bias: bool, precision):
    """Build the matmul kernel; bias-free variant has no bias ref at all."""

    def compute(x_ref, wt_ref, b_ref, o_ref, acc_ref):
        k = pl.program_id(2)

        @pl.when(k == 0)
        def _init():
            acc_ref[...] = jnp.zeros_like(acc_ref)

        # Plain x @ w_t on the MXU, f32 accumulation (the "all-reduce" buffer).
        if precision is None:
            acc_ref[...] += jnp.dot(
                x_ref[...], wt_ref[...], preferred_element_type=jnp.float32
            )
        else:
            acc_ref[...] += jnp.dot(
                x_ref[...], wt_ref[...],
                preferred_element_type=jnp.float32, precision=precision,
            )

        @pl.when(k == pl.num_programs(2) - 1)
        def _finalize():
            acc = acc_ref[...]
            if has_bias:
                acc = acc + b_ref[...].astype(jnp.float32)
            o_ref[...] = acc.astype(o_ref.dtype)

    if has_bias:
        def kernel(x_ref, wt_ref, b_ref, o_ref, acc_ref):
            compute(x_ref, wt_ref, b_ref, o_ref, acc_ref)
    else:
        def kernel(x_ref, wt_ref, o_ref, acc_ref):
            compute(x_ref, wt_ref, None, o_ref, acc_ref)
    return kernel


def _w_spec(shape, index_map, extra_buffered: bool):
    """Weight-tile BlockSpec; triple-buffer the stream on long K grids."""
    if extra_buffered and hasattr(pl, "Buffered"):
        try:
            return pl.BlockSpec(shape, index_map, pipeline_mode=pl.Buffered(3))
        except TypeError:
            pass
    return pl.BlockSpec(shape, index_map)


def prepare_row_parallel_params(
    weight,
    bias=None,
    *,
    operand_dtype=jnp.bfloat16,
    tn=1024,
    tk=1024,
    lane_align=256,
):
    """One-time (parameter-load-time) weight preparation.

    weight : [out_features, in_features]  (concat of per-rank (out, in_pp) shards)
    bias   : [out_features] or None
    operand_dtype : dtype fed to the MXU (bf16 default); None keeps weight dtype.

    Pre-transposes to (K, N) (lane-dense along N, no in-kernel transpose),
    casts once, and zero-pads K/N to tile multiples ONCE so the forward pass
    never re-reads/re-writes the weight in HBM.
    """
    weight = jnp.asarray(weight)
    out_features, in_features = weight.shape

    # Keep tiles 256-aligned (full v6e/v7x 256x256 MXU), shrink for small dims.
    tn = min(tn, _round_up(out_features, lane_align))
    tk = min(tk, _round_up(in_features, lane_align))
    n_pad = _round_up(out_features, tn)
    k_pad = _round_up(in_features, tk)

    w_t = weight.T
    if operand_dtype is not None:
        w_t = w_t.astype(operand_dtype)
    if (k_pad, n_pad) != (in_features, out_features):
        # Zero K-padding is what keeps the folded reduction exact.
        w_t = jnp.pad(w_t, ((0, k_pad - in_features), (0, n_pad - out_features)))

    b2d = None
    if bias is not None:
        b2d = jnp.asarray(bias).astype(jnp.float32).reshape(1, out_features)
        if n_pad != out_features:
            b2d = jnp.pad(b2d, ((0, 0), (0, n_pad - out_features)))

    return dict(
        w_t=w_t, bias=b2d,
        in_features=in_features, out_features=out_features,
        tn=tn, tk=tk, operand_dtype=operand_dtype,
    )


def row_parallel_linear(
    x,
    params,
    *,
    world_size,
    tm=512,
    precision=None,          # e.g. jax.lax.Precision.HIGHEST for exact-f32 path
    vmem_limit_bytes=None,
):
    """RowParallelLinear forward using pre-prepared params.

    x : [..., in_features] (feature-last, as F.linear).
    The cross-rank all-reduce is realized as the folded K-grid reduction.
    """
    # TODO(synk): real multi-device scatter/all-reduce (RDMA via
    # make_async_remote_copy) is not emitted; the cross-rank sum is folded
    # into the K reduction on one device.
    w_t = params["w_t"]
    b2d = params["bias"]
    in_features = params["in_features"]
    out_features = params["out_features"]
    tn = params["tn"]
    tk = params["tk"]
    op_dtype = params["operand_dtype"]

    *lead, in_f = x.shape
    assert in_f == in_features
    assert in_features % world_size == 0, (
        "in_features must be divisible by world_size"
    )
    out_dtype = x.dtype

    m = 1
    for d in lead:
        m *= d
    x2d = x.reshape(m, in_features)
    if op_dtype is not None:
        if x2d.dtype != op_dtype:
            x2d = x2d.astype(op_dtype)
    elif x2d.dtype != w_t.dtype:
        x2d = x2d.astype(w_t.dtype)

    k_pad, n_pad = w_t.shape

    # Round tm to the sublane pack of the operand dtype (f32:8, bf16:16, 8-bit:32).
    itemsize = jnp.dtype(x2d.dtype).itemsize
    m_align = 8 if itemsize >= 4 else (16 if itemsize == 2 else 32)
    tm = min(tm, _round_up(m, m_align))
    m_p = _round_up(m, tm)

    # v7x has 2 TensorCores sharded over the "parallel" axes: make sure the
    # parallel grid has >= 2 tiles when it is cheap to do so.
    if (m_p // tm) * (n_pad // tn) < 2:
        if tn % 512 == 0:
            tn //= 2
        elif tm % (2 * m_align) == 0:
            tm //= 2
            m_p = _round_up(m, tm)

    # Generation-aware VMEM ceiling: v7x 64 MiB/TC, v5e/v6e 128 MiB. Count the
    # double-buffered x / w / out tiles plus the f32 accumulator and shrink
    # tiles (K first, then N, then M) until the config fits with headroom.
    bpe_x = jnp.dtype(x2d.dtype).itemsize
    bpe_w = jnp.dtype(w_t.dtype).itemsize
    bpe_o = jnp.dtype(out_dtype).itemsize
    has_bias = b2d is not None

    def _resident(tm_, tn_, tk_, wbuf_):
        r = (2 * tm_ * tk_ * bpe_x + wbuf_ * tk_ * tn_ * bpe_w
             + 2 * tm_ * tn_ * bpe_o + tm_ * tn_ * 4)
        if has_bias:
            r += 2 * tn_ * 4
        return r

    cap = _vmem_capacity_bytes()
    budget = max(32 << 20, cap - (16 << 20))  # leave compiler scratch headroom
    wbuf = 3 if (k_pad // tk) >= 4 else 2
    while _resident(tm, tn, tk, wbuf) > budget:
        if tk >= 512:
            tk //= 2
        elif tn >= 512:
            tn //= 2
        elif tm > m_align and tm % 2 == 0:
            tm //= 2
        else:
            break
        wbuf = 3 if (k_pad // tk) >= 4 else 2
    m_p = _round_up(m, tm)
    k_steps = k_pad // tk
    extra_w_buf = k_steps >= 4

    if vmem_limit_bytes is None:
        vmem_limit_bytes = int(min(budget, 128 * 1024 * 1024))

    # Pad the activation only if actually required. K zero-padding keeps the
    # reduction exact; padded M rows are sliced off afterwards.
    if m_p != m or k_pad != in_features:
        x2d = jnp.pad(x2d, ((0, m_p - m), (0, k_pad - in_features)))

    grid = (m_p // tm, n_pad // tn, k_steps)

    in_specs = [
        pl.BlockSpec((tm, tk), lambda i, j, k: (i, k)),                 # x tile
        _w_spec((tk, tn), lambda i, j, k: (k, j), extra_w_buf),         # w_t tile
    ]
    operands = [x2d, w_t]
    if has_bias:
        in_specs.append(pl.BlockSpec((1, tn), lambda i, j, k: (0, j)))  # bias
        operands.append(b2d)

    kernel = _make_kernel(has_bias, precision)

    out2d = pl.pallas_call(
        kernel,
        out_shape=jax.ShapeDtypeStruct((m_p, n_pad), out_dtype),
        grid_spec=pltpu.PrefetchScalarGridSpec(
            num_scalar_prefetch=0,
            grid=grid,
            in_specs=in_specs,
            out_specs=pl.BlockSpec((tm, tn), lambda i, j, k: (i, j)),
            scratch_shapes=[pltpu.VMEM((tm, tn), jnp.float32)],
        ),
        compiler_params=pltpu.CompilerParams(
            # M/N tiles independent -> shard across TensorCores; the folded
            # rank/K axis is the reduction -> "arbitrary".
            dimension_semantics=("parallel", "parallel", "arbitrary"),
            vmem_limit_bytes=vmem_limit_bytes,
        ),
    )(*operands)

    out2d = out2d[:m, :out_features]
    return out2d.reshape(*lead, out_features)


def row_parallel_linear_from_weight(
    x, weight, bias=None, *, world_size, operand_dtype=jnp.bfloat16, **kwargs
):
    """Convenience one-shot API (prep + forward). Prefer preparing once."""
    params = prepare_row_parallel_params(weight, bias, operand_dtype=operand_dtype)
    return row_parallel_linear(x, params, world_size=world_size, **kwargs)


if __name__ == "__main__":
    # Simulated tensor-parallel world size (ParallelMode.TENSOR group size).
    WORLD_SIZE = 2

    batch, seq = 2, 64            # M = 128
    in_features = 512             # divisible by WORLD_SIZE; in_pp = 256
    out_features = 384            # not a multiple of 256 -> exercises N padding

    key = jax.random.PRNGKey(0)
    kx, kw, kb = jax.random.split(key, 3)

    x = jax.random.normal(kx, (batch, seq, in_features), dtype=jnp.float32)
    # Full concatenation of the per-rank (out_features, in_per_partition) shards.
    weight = jax.random.normal(kw, (out_features, in_features), dtype=jnp.float32)
    bias = jax.random.normal(kb, (out_features,), dtype=jnp.float32)

    # --- default path: bf16-fed MXU, f32 accumulation, prep hoisted once ----
    params_bf16 = prepare_row_parallel_params(weight, bias, tk=256)  # 2 K steps
    out_bf = row_parallel_linear(x, params_bf16, world_size=WORLD_SIZE)
    out_bf = jax.block_until_ready(out_bf)

    ref_bf = (
        jnp.einsum(
            "bsi,oi->bso",
            x.astype(jnp.bfloat16),
            weight.astype(jnp.bfloat16),
            preferred_element_type=jnp.float32,
        )
        + bias
    )
    assert out_bf.shape == (batch, seq, out_features)
    err_bf = float(jnp.max(jnp.abs(out_bf.astype(jnp.float32) - ref_bf)))
    assert jnp.allclose(out_bf.astype(jnp.float32), ref_bf, atol=2e-2, rtol=2e-2), err_bf

    # --- no-bias kernel variant (separate kernel, no zero tile DMA'd) -------
    params_nb = prepare_row_parallel_params(weight, None, tk=256)
    out_nb = row_parallel_linear(x, params_nb, world_size=WORLD_SIZE)
    out_nb = jax.block_until_ready(out_nb)
    err_nb = float(jnp.max(jnp.abs(out_nb + bias - out_bf)))
    assert jnp.allclose(out_nb + bias, out_bf, atol=1e-4, rtol=1e-4), err_nb

    # --- f32 operand path. NOTE: default MXU precision may use bf16 passes for
    # f32 operands; pass precision=jax.lax.Precision.HIGHEST if exact-f32
    # behavior is required. Tolerances here are chosen accordingly. ----------
    params_f32 = prepare_row_parallel_params(
        weight, bias, operand_dtype=None, tk=256
    )
    out_f32 = row_parallel_linear(x, params_f32, world_size=WORLD_SIZE)
    out_f32 = jax.block_until_ready(out_f32)
    ref = (
        jnp.einsum("bsi,oi->bso", x, weight, precision=jax.lax.Precision.HIGHEST)
        + bias
    )
    err_f32 = float(jnp.max(jnp.abs(out_f32 - ref)))
    assert jnp.allclose(out_f32, ref, atol=1e-1, rtol=2e-2), err_f32

    print("KERNEL_OK")
</pallas_src>

<mosaic_0001>
module attributes {stable_mosaic.version = 11 : i64} {
  func.func @kernel(%arg0: i32, %arg1: i32, %arg2: i32, %arg3: memref<128x256xbf16, #tpu.memory_space<vmem>>, %arg4: memref<256x256xbf16, #tpu.memory_space<vmem>>, %arg5: memref<1x256xf32, #tpu.memory_space<vmem>>, %arg6: memref<128x256xf32, #tpu.memory_space<vmem>>, %arg7: memref<128x256xf32, #tpu.memory_space<vmem>>) attributes {dimension_semantics = [#tpu.dimension_semantics<parallel>, #tpu.dimension_semantics<parallel>, #tpu.dimension_semantics<arbitrary>], iteration_bounds = array<i64: 1, 2, 2>, scalar_prefetch = 0 : i64, scratch_operands = 1 : i64, tpu.core_type = #tpu.core_type<tc>, window_params = [{transform_indices = @transform_0, window_bounds = array<i64: 128, 256>}, {transform_indices = @transform_1, window_bounds = array<i64: 256, 256>}, {transform_indices = @transform_2, window_bounds = array<i64: 1, 256>}, {transform_indices = @transform_3, window_bounds = array<i64: 128, 256>}]} {
    %c0_i32 = arith.constant 0 : i32
    %0 = arith.cmpi eq, %arg2, %c0_i32 : i32
    %1 = arith.extui %0 : i1 to i32
    %c0_i32_0 = arith.constant 0 : i32
    %2 = arith.cmpi ne, %1, %c0_i32_0 : i32
    scf.if %2 {
      %cst_9 = arith.constant 0.000000e+00 : f32
      %12 = vector.broadcast %cst_9 : f32 to vector<128x256xf32>
      %c0_10 = arith.constant 0 : index
      %c0_11 = arith.constant 0 : index
      %13 = vector.load %arg7[%c0_10, %c0_11] : memref<128x256xf32, #tpu.memory_space<vmem>>, vector<128x256xf32>
      tpu.vector_store %arg7[%c0_10, %c0_11], %12 {strides = array<i32>} : memref<128x256xf32, #tpu.memory_space<vmem>>, vector<128x256xf32>,
    } else {
    }
    %c0 = arith.constant 0 : index
    %c0_1 = arith.constant 0 : index
    %3 = vector.load %arg7[%c0, %c0_1] : memref<128x256xf32, #tpu.memory_space<vmem>>, vector<128x256xf32>
    %c0_2 = arith.constant 0 : index
    %c0_3 = arith.constant 0 : index
    %4 = vector.load %arg3[%c0_2, %c0_3] : memref<128x256xbf16, #tpu.memory_space<vmem>>, vector<128x256xbf16>
    %c0_4 = arith.constant 0 : index
    %c0_5 = arith.constant 0 : index
    %5 = vector.load %arg4[%c0_4, %c0_5] : memref<256x256xbf16, #tpu.memory_space<vmem>>, vector<256x256xbf16>
    %cst = arith.constant dense<0.000000e+00> : vector<128x256xf32>
    %6 = tpu.matmul %4, %5, %cst {dimension_numbers = #tpu.dot_dimension_numbers<[1], [0], [0], [1], [0, 0, 1, 1], [], []>} : vector<128x256xbf16>, vector<256x256xbf16>, vector<128x256xf32> -> vector<128x256xf32>
    %7 = arith.addf %3, %6 : vector<128x256xf32>
    %c0_6 = arith.constant 0 : index
    %c0_7 = arith.constant 0 : index
    %8 = vector.load %arg7[%c0_6, %c0_7] : memref<128x256xf32, #tpu.memory_space<vmem>>, vector<128x256xf32>
    tpu.vector_store %arg7[%c0_6, %c0_7], %7 {strides = array<i32>} : memref<128x256xf32, #tpu.memory_space<vmem>>, vector<128x256xf32>,
    %c1_i32 = arith.constant 1 : i32
    %9 = arith.cmpi eq, %arg2, %c1_i32 : i32
    %10 = arith.extui %9 : i1 to i32
    %c0_i32_8 = arith.constant 0 : i32
    %11 = arith.cmpi ne, %10, %c0_i32_8 : i32
    scf.if %11 {
      %c0_9 = arith.constant 0 : index
      %c0_10 = arith.constant 0 : index
      %12 = vector.load %arg7[%c0_9, %c0_10] : memref<128x256xf32, #tpu.memory_space<vmem>>, vector<128x256xf32>
      %c0_11 = arith.constant 0 : index
      %c0_12 = arith.constant 0 : index
      %13 = vector.load %arg5[%c0_11, %c0_12] : memref<1x256xf32, #tpu.memory_space<vmem>>, vector<1x256xf32>
      %14 = vector.broadcast %13 : vector<1x256xf32> to vector<128x256xf32>
      %15 = arith.addf %12, %14 : vector<128x256xf32>
      %c0_13 = arith.constant 0 : index
      %c0_14 = arith.constant 0 : index
      %16 = vector.load %arg6[%c0_13, %c0_14] : memref<128x256xf32, #tpu.memory_space<vmem>>, vector<128x256xf32>
      tpu.vector_store %arg6[%c0_13, %c0_14], %15 {strides = array<i32>} : memref<128x256xf32, #tpu.memory_space<vmem>>, vector<128x256xf32>,
    } else {
    }
    return
  }
  func.func @transform_0(%arg0: i32, %arg1: i32, %arg2: i32) -> (i32, i32) {
    %c0_i32 = arith.constant 0 : i32
    return %arg0, %arg2 : i32, i32
  }
  func.func @transform_1(%arg0: i32, %arg1: i32, %arg2: i32) -> (i32, i32) {
    %c0_i32 = arith.constant 0 : i32
    return %arg2, %arg1 : i32, i32
  }
  func.func @transform_2(%arg0: i32, %arg1: i32, %arg2: i32) -> (i32, i32) {
    %c0_i32 = arith.constant 0 : i32
    %c0_i32_0 = arith.constant 0 : i32
    return %c0_i32, %arg1 : i32, i32
  }
  func.func @transform_3(%arg0: i32, %arg1: i32, %arg2: i32) -> (i32, i32) {
    %c0_i32 = arith.constant 0 : i32
    return %arg0, %arg1 : i32, i32
  }
}

</mosaic_0001>

<llo_original>
// kernel: tpu_custom_call.1
$region0: #{tpu_custom_call.1}
  #allocation0 [shape = 'u32[]', space=smem, size = 0x4, offset = 0x4, fixed_abs, tag = 'smem constant byte address 0x4 - core index']
  #allocation1 [shape = 'u32[144,128]{1,0:T(1,128)}', space=vmem, size = 0x12000, scoped, tag = 'internal scratch']
  #allocation2 [shape = 'f32[128,256]{1,0:T(8,128)}', space=vmem, size = 0x20000, scoped, tag = 'scratch operand']
  %s0 = inlined_call_operand.hbm [shape: bf16[128,512], index: 0, kind: input, shape index: {}]
  %s1 = inlined_call_operand.hbm [shape: bf16[512,512], index: 1, kind: input, shape index: {}]
  %s2 = inlined_call_operand.hbm [shape: f32[1,512], index: 2, kind: input, shape index: {}]
  %s3 = inlined_call_operand.hbm [shape: f32[128,512], index: 3, kind: output, shape index: {}]
  %s4 = sld [smem:[#allocation0]]
  $region65: #{tpu_custom_call.1} parent=0
    _
  %s6 = ssub.s32 1, %s4
  %s7 = scalar_select 0, %s6, %s4
  $region1: #{tpu_custom_call.1} parent=0
    #allocation3 [shape = 'u8[131072]{0}', space=vmem, size = 0x20000, scoped, tag = 'input window, operand 0']
    #allocation4 [shape = 's32[2]{0}', space=sflag, size = 0x8, scoped, tag = 'scoped memory for tpu_custom_call.1']
    #allocation5 [shape = 's32[2]{0}', space=sflag, size = 0x8, scoped, tag = 'scoped memory for tpu_custom_call.1']
    #allocation6 [shape = 'u8[262144]{0}', space=vmem, size = 0x40000, scoped, tag = 'input window, operand 1']
    #allocation7 [shape = 's32[2]{0}', space=sflag, size = 0x8, scoped, tag = 'scoped memory for tpu_custom_call.1']
    #allocation8 [shape = 'u8[2048]{0}', space=vmem, size = 0x800, scoped, tag = 'input window, operand 2']
    #allocation9 [shape = 'u8[262144]{0}', space=vmem, size = 0x40000, scoped, tag = 'output window, operand 0']
    %8 = vsyncpa [#allocation4], 0
    %s9 = scalar_lea.sflag [#allocation4], 1
    %10 = vsyncpa %s9, 0
    %11 = vsyncpa [#allocation7], 0
    %s12 = scalar_lea.sflag [#allocation7], 1
    %13 = vsyncpa %s12, 0
    %14 = vsyncpa [#allocation5], 0
    %s15 = scalar_lea.sflag [#allocation5], 1
    %16 = vsyncpa %s15, 0
    loop: start=0, step=1, limit=6
    $region2: #{tpu_custom_call.1} parent=1 // loop_pre_header
      _
    $region3: #{tpu_custom_call.1} parent=1 // loop_header
      %s18 = sphi 0, %s22
      %p19 = scmp.ge.s32.totalorder %s18, 6
      %s25 = sphi 0, %s44
      %s26 = sphi 0, %s40
      %s27 = sphi 0, %s36
      %s28 = sphi 0, %s25
      %s29 = sphi 0, %s26
      %s30 = sphi 0, %s27
      %s31 = sphi 0, %s28
      %s32 = sphi 0, %s29
      %s33 = sphi 0, %s30
      %s49 = sphi 0, %s51
      %s52 = sphi 0, %s49
      %s53 = sphi 0, %s52
      %s69 = sphi 0, %s53
      %s77 = sphi 0, %s79
      %s80 = sphi 0, %s77
      %s81 = sphi 0, %s80
      %s97 = sphi 0, %s81
      %s103 = sphi 0, %s105
      %s106 = sphi 0, %s103
      %s107 = sphi 0, %s106
      %s123 = sphi 0, %s107
      %s131 = sphi 0, %s133
      %s134 = sphi 0, %s131
      %s135 = sphi 0, %s134
      %s151 = sphi 0, %s135
    $region4: #{tpu_custom_call.1} parent=1 // loop_header_branch
      %21 = sbr.rel (%p19) target = $region8
    $region5: #{tpu_custom_call.1} parent=1 // loop_body
      %s23 = ssub.s32 %s18, 1
      %s24 = ssub.s32 %s18, 2
      %s34 = sadd.s32 1, %s27
      %p35 = scmp.ge.s32.totalorder %s34, 2
      %s36 = scalar_select %p35, 0, %s34
      %s37 = sadd.s32 1, %s26
      %s38 = scalar_select %p35, %s37, %s26
      %p39 = scmp.ge.s32.totalorder %s38, 2
      %s40 = scalar_select %p39, 0, %s38
      %s41 = sadd.s32 1, %s25
      %s42 = scalar_select %p39, %s41, %s25
      %p43 = scmp.ge.s32.totalorder %s42, 1
      %s44 = scalar_select %p43, 0, %s42
      %s45 = ssub.s32 %s25, %s44
      %s46 = ssub.s32 %s27, %s36
      %s47 = sor.u32 %s45, %s46
      %p48 = scmp.eq.s32.totalorder %s47, 0
      %s50 = sadd.s32 %s49, 1
      %s51 = scalar_select %p48, %s49, %s50
      %p54 = pneg %p48
      %p55 = scmp.eq.s32.totalorder %s18, 3
      %p56 = por %p54, %p55
      %p57 = scmp.ne.s32.totalorder %s49, %s52
      %p58 = scmp.eq.s32.totalorder %s18, 0
      %p59 = por %p57, %p58
      %p60 = scmp.ne.s32.totalorder %s49, %s52
      %p61 = scmp.eq.s32.totalorder %s23, 3
      %p62 = por %p60, %p61
      %p63 = scmp.ne.s32.totalorder %s52, %s53
      %p64 = scmp.eq.s32.totalorder %s23, 0
      %p65 = por %p63, %p64
      %p66 = scmp.ne.s32.totalorder %s52, %s53
      %p67 = scmp.eq.s32.totalorder %s24, 3
      %p68 = por %p66, %p67
      %p70 = scmp.ne.s32.totalorder %s53, %s69
      %p71 = scmp.eq.s32.totalorder %s24, 0
      %p72 = por %p70, %p71
      %s73 = ssub.s32 %s27, %s36
      %s74 = ssub.s32 %s26, %s40
      %s75 = sor.u32 %s73, %s74
      %p76 = scmp.eq.s32.totalorder %s75, 0
      %s78 = sadd.s32 %s77, 1
      %s79 = scalar_select %p76, %s77, %s78
      %p82 = pneg %p76
      %p83 = scmp.eq.s32.totalorder %s18, 3
      %p84 = por %p82, %p83
      %p85 = scmp.ne.s32.totalorder %s77, %s80
      %p86 = scmp.eq.s32.totalorder %s18, 0
      %p87 = por %p85, %p86
      %p88 = scmp.ne.s32.totalorder %s77, %s80
      %p89 = scmp.eq.s32.totalorder %s23, 3
      %p90 = por %p88, %p89
      %p91 = scmp.ne.s32.totalorder %s80, %s81
      %p92 = scmp.eq.s32.totalorder %s23, 0
      %p93 = por %p91, %p92
      %p94 = scmp.ne.s32.totalorder %s80, %s81
      %p95 = scmp.eq.s32.totalorder %s24, 3
      %p96 = por %p94, %p95
      %p98 = scmp.ne.s32.totalorder %s81, %s97
      %p99 = scmp.eq.s32.totalorder %s24, 0
      %p100 = por %p98, %p99
      %s101 = ssub.s32 %s26, %s40
      %p102 = scmp.eq.s32.totalorder %s101, 0
      %s104 = sadd.s32 %s103, 1
      %s105 = scalar_select %p102, %s103, %s104
      %p108 = pneg %p102
      %p109 = scmp.eq.s32.totalorder %s18, 3
      %p110 = por %p108, %p109
      %p111 = scmp.ne.s32.totalorder %s103, %s106
      %p112 = scmp.eq.s32.totalorder %s18, 0
      %p113 = por %p111, %p112
      %p114 = scmp.ne.s32.totalorder %s103, %s106
      %p115 = scmp.eq.s32.totalorder %s23, 3
      %p116 = por %p114, %p115
      %p117 = scmp.ne.s32.totalorder %s106, %s107
      %p118 = scmp.eq.s32.totalorder %s23, 0
      %p119 = por %p117, %p118
      %p120 = scmp.ne.s32.totalorder %s106, %s107
      %p121 = scmp.eq.s32.totalorder %s24, 3
      %p122 = por %p120, %p121
      %p124 = scmp.ne.s32.totalorder %s107, %s123
      %p125 = scmp.eq.s32.totalorder %s24, 0
      %p126 = por %p124, %p125
      %s127 = ssub.s32 %s25, %s44
      %s128 = ssub.s32 %s26, %s40
      %s129 = sor.u32 %s127, %s128
      %p130 = scmp.eq.s32.totalorder %s129, 0
      %s132 = sadd.s32 %s131, 1
      %s133 = scalar_select %p130, %s131, %s132
      %p136 = pneg %p130
      %p137 = scmp.eq.s32.totalorder %s18, 3
      %p138 = por %p136, %p137
      %p139 = scmp.ne.s32.totalorder %s131, %s134
      %p140 = scmp.eq.s32.totalorder %s18, 0
      %p141 = por %p139, %p140
      %p142 = scmp.ne.s32.totalorder %s131, %s134
      %p143 = scmp.eq.s32.totalorder %s23, 3
      %p144 = por %p142, %p143
      %p145 = scmp.ne.s32.totalorder %s134, %s135
      %p146 = scmp.eq.s32.totalorder %s23, 0
      %p147 = por %p145, %p146
      %p148 = scmp.ne.s32.totalorder %s134, %s135
      %p149 = scmp.eq.s32.totalorder %s24, 3
      %p150 = por %p148, %p149
      %p152 = scmp.ne.s32.totalorder %s135, %s151
      %p153 = scmp.eq.s32.totalorder %s24, 0
      %p154 = por %p152, %p153
      %p155 = scmp.le.s32.totalorder 1, %s18
      %p156 = scmp.lt.s32.totalorder %s18, 5
      %p157 = pnand %p155, %p156
      %p158 = pneg %p157
      // Predicated region
      $region9: #{tpu_custom_call.1} parent=5 // pred_check
        _
      $region10: #{tpu_custom_call.1} parent=5 // pred_check_branch
        %160 = sbr.rel (%p157) target = $region12
      $region11: #{tpu_custom_call.1} parent=5 // pred_region
        %s161 = ssub.s32 %s18, 1
      $region12: #{tpu_custom_call.1} parent=5 // pred_fallthru
        _
      %p162 = scmp.lt.s32.totalorder %s18, 4
      // Predicated region
      $region13: #{tpu_custom_call.1} parent=5 // pred_check
        %p163 = pneg %p162
      $region14: #{tpu_custom_call.1} parent=5 // pred_check_branch
        %165 = sbr.rel (%p163) target = $region16
      $region15: #{tpu_custom_call.1} parent=5 // pred_region
        // Predicated region
        $region17: #{tpu_custom_call.1} parent=15 // pred_check
          %p166 = pneg %p59
        $region18: #{tpu_custom_call.1} parent=15 // pred_check_branch
          %168 = sbr.rel (%p166) target = $region20
        $region19: #{tpu_custom_call.1} parent=15 // pred_region
          %s169 = sand.u32 %s49, 1
          %s170 = scalar_lea.sflag [#allocation4], %s169
          %s171 = sand.u32 %s49, 1
          %s172 = smul.addr %s171, 128
          %s173 = scalar_lea.vmem [#allocation3], %s172
          %s174 = smul.u32 16, %s25
          %s175 = smul.u32 2, %s27
          %s177 = ssub.s32 2048, 2048
          %178 = vsyncadd %s170, %s177
          %s179 = smul.addr %s174, 4
          %s180 = sadd.s32 %s175, %s179
          %s181 = smul.addr %s180, 64
          %s182 = scalar_lea.hbm %s0, %s181
          %s183 = sshll.u32 %s173, 4
          %s184 = int_to_ptr.vmem [resolvable:$true] %s183
          %189 = dma.hbm_to_vmem [thread:$0]  %s182, 2048, %s184, %s170, 256, 128, 8
        $region20: #{tpu_custom_call.1} parent=15 // pred_fallthru
          _
        // Predicated region
        $region21: #{tpu_custom_call.1} parent=15 // pred_check
          %p190 = pneg %p87
        $region22: #{tpu_custom_call.1} parent=15 // pred_check_branch
          %192 = sbr.rel (%p190) target = $region24
        $region23: #{tpu_custom_call.1} parent=15 // pred_region
          %s193 = sand.u32 %s18, 1
          %s194 = scalar_lea.sflag [#allocation7], %s193
          %s195 = sand.u32 %s77, 1
          %s196 = smul.addr %s195, 256
          %s197 = scalar_lea.vmem [#allocation6], %s196
          %s198 = smul.u32 32, %s27
          %s199 = smul.u32 2, %s26
          %s201 = ssub.s32 4096, 4096
          %202 = vsyncadd %s194, %s201
          %s203 = smul.addr %s198, 4
          %s204 = sadd.s32 %s199, %s203
          %s205 = smul.addr %s204, 64
          %s206 = scalar_lea.hbm %s1, %s205
          %s207 = sshll.u32 %s197, 4
          %s208 = int_to_ptr.vmem [resolvable:$true] %s207
          %213 = dma.hbm_to_vmem [thread:$0]  %s206, 4096, %s208, %s194, 256, 128, 8
        $region24: #{tpu_custom_call.1} parent=15 // pred_fallthru
          _
        // Predicated region
        $region25: #{tpu_custom_call.1} parent=15 // pred_check
          %p214 = pneg %p113
        $region26: #{tpu_custom_call.1} parent=15 // pred_check_branch
          %216 = sbr.rel (%p214) target = $region28
        $region27: #{tpu_custom_call.1} parent=15 // pred_region
          %s217 = sand.u32 %s18, 1
          %s218 = scalar_lea.sflag [#allocation7], %s217
          %s219 = sand.u32 %s103, 1
          %s220 = smul.addr %s219, 2
          %s221 = scalar_lea.vmem [#allocation8], %s220
          %s222 = smul.u32 2, %s26
          %s224 = ssub.s32 32, 32
          %225 = vsyncadd %s218, %s224
          %s226 = smul.addr %s222, 16
          %s227 = scalar_lea.hbm %s2, %s226
          %s229 = sshll.u32 %s221, 4
          %s230 = int_to_ptr.vmem [resolvable:$true] %s229
          %232 = dma.hbm_to_vmem [thread:$0]  %s227, 32, %s230, %s218
        $region28: #{tpu_custom_call.1} parent=15 // pred_fallthru
          _
      $region16: #{tpu_custom_call.1} parent=5 // pred_fallthru
        _
      %p233 = scmp.le.s32.totalorder 1, %s18
      %p234 = scmp.lt.s32.totalorder %s18, 5
      %p235 = pnand %p233, %p234
      %p236 = pneg %p235
      // Predicated region
      $region29: #{tpu_custom_call.1} parent=5 // pred_check
        _
      $region30: #{tpu_custom_call.1} parent=5 // pred_check_branch
        %238 = sbr.rel (%p235) target = $region32
      $region31: #{tpu_custom_call.1} parent=5 // pred_region
        %s239 = ssub.s32 %s18, 1
        %s240 = sand.u32 %s52, 1
        %s241 = scalar_lea.sflag [#allocation4], %s240
        %s242 = sand.u32 %s52, 1
        %s243 = smul.addr %s242, 128
        %s244 = scalar_lea.vmem [#allocation3], %s243
        // Predicated region
        $region33: #{tpu_custom_call.1} parent=31 // pred_check
          %p245 = pneg %p65
        $region34: #{tpu_custom_call.1} parent=31 // pred_check_branch
          %247 = sbr.rel (%p245) target = $region36
        $region35: #{tpu_custom_call.1} parent=31 // pred_region
          %248 = dma.done %s241, 2048
        $region36: #{tpu_custom_call.1} parent=31 // pred_fallthru
          _
        %s249 = sand.u32 %s23, 1
        %s250 = scalar_lea.sflag [#allocation7], %s249
        %s251 = sand.u32 %s80, 1
        %s252 = smul.addr %s251, 256
        %s253 = scalar_lea.vmem [#allocation6], %s252
        // Predicated region
        $region37: #{tpu_custom_call.1} parent=31 // pred_check
          %p254 = pneg %p93
        $region38: #{tpu_custom_call.1} parent=31 // pred_check_branch
          %256 = sbr.rel (%p254) target = $region40
        $region39: #{tpu_custom_call.1} parent=31 // pred_region
          %257 = dma.done %s250, 4096
        $region40: #{tpu_custom_call.1} parent=31 // pred_fallthru
          _
        %s258 = sand.u32 %s23, 1
        %s259 = scalar_lea.sflag [#allocation7], %s258
        %s260 = sand.u32 %s106, 1
        %s261 = smul.addr %s260, 2
        %s262 = scalar_lea.vmem [#allocation8], %s261
        // Predicated region
        $region41: #{tpu_custom_call.1} parent=31 // pred_check
          %p263 = pneg %p119
        $region42: #{tpu_custom_call.1} parent=31 // pred_check_branch
          %265 = sbr.rel (%p263) target = $region44
        $region43: #{tpu_custom_call.1} parent=31 // pred_region
          %266 = dma.done %s259, 32
        $region44: #{tpu_custom_call.1} parent=31 // pred_fallthru
          _
        %s267 = sand.u32 %s52, 1
        %s268 = scalar_lea.sflag [#allocation4], %s267
        %s269 = sand.u32 %s52, 1
        %s270 = smul.addr %s269, 128
        %s271 = scalar_lea.vmem [#allocation3], %s270
        %p272 = pneg %p65
        %p273 = pneg %p62
        %s274 = sand.u32 %s23, 1
        %s275 = scalar_lea.sflag [#allocation7], %s274
        %s276 = sand.u32 %s80, 1
        %s277 = smul.addr %s276, 256
        %s278 = scalar_lea.vmem [#allocation6], %s277
        %p279 = pneg %p93
        %p280 = pneg %p90
        %s281 = sand.u32 %s23, 1
        %s282 = scalar_lea.sflag [#allocation7], %s281
        %s283 = sand.u32 %s106, 1
        %s284 = smul.addr %s283, 2
        %s285 = scalar_lea.vmem [#allocation8], %s284
        %p286 = pneg %p119
        %p287 = pneg %p116
        %p288 = pneg %p147
        %p289 = pneg %p144
        %s290 = sand.u32 %s134, 1
        %s291 = scalar_lea.sflag [#allocation5], %s290
        %s292 = sand.u32 %s134, 1
        %s293 = smul.addr %s292, 256
        %s294 = scalar_lea.vmem [#allocation9], %s293
        %s295 = smul.u32 16, %s28
        %s296 = smul.u32 2, %s30
        %s297 = smul.u32 32, %s30
        %s298 = smul.u32 2, %s29
        %s299 = smul.u32 2, %s29
        %s300 = smul.u32 16, %s28
        %s301 = smul.u32 2, %s29
        %p302 = scmp.eq.s32.totalorder %s30, 0
        // Predicated region
        $region45: #{tpu_custom_call.1} parent=31 // pred_check
          %p303 = pneg %p302
        $region46: #{tpu_custom_call.1} parent=31 // pred_check_branch
          %305 = sbr.rel (%p303) target = $region48
        $region47: #{tpu_custom_call.1} parent=31 // pred_region
          %306 = vst [vmem:[#allocation2] sm:$0xff] 0.0
          %307 = vst [vmem:[#allocation2 + $0x8] sm:$0xff] 0.0
          %308 = vst [vmem:[#allocation2 + $0x10] sm:$0xff] 0.0
          %309 = vst [vmem:[#allocation2 + $0x18] sm:$0xff] 0.0
          %310 = vst [vmem:[#allocation2 + $0x20] sm:$0xff] 0.0
          %311 = vst [vmem:[#allocation2 + $0x28] sm:$0xff] 0.0
          %312 = vst [vmem:[#allocation2 + $0x30] sm:$0xff] 0.0
          %313 = vst [vmem:[#allocation2 + $0x38] sm:$0xff] 0.0
          %314 = vst [vmem:[#allocation2 + $0x40] sm:$0xff] 0.0
          %315 = vst [vmem:[#allocation2 + $0x48] sm:$0xff] 0.0
          %316 = vst [vmem:[#allocation2 + $0x50] sm:$0xff] 0.0
          %317 = vst [vmem:[#allocation2 + $0x58] sm:$0xff] 0.0
          %318 = vst [vmem:[#allocation2 + $0x60] sm:$0xff] 0.0
          %319 = vst [vmem:[#allocation2 + $0x68] sm:$0xff] 0.0
          %320 = vst [vmem:[#allocation2 + $0x70] sm:$0xff] 0.0
          %321 = vst [vmem:[#allocation2 + $0x78] sm:$0xff] 0.0
          %322 = vst [vmem:[#allocation2 + $0x80] sm:$0xff] 0.0
          %323 = vst [vmem:[#allocation2 + $0x88] sm:$0xff] 0.0
          %324 = vst [vmem:[#allocation2 + $0x90] sm:$0xff] 0.0
          %325 = vst [vmem:[#allocation2 + $0x98] sm:$0xff] 0.0
          %326 = vst [vmem:[#allocation2 + $0xa0] sm:$0xff] 0.0
          %327 = vst [vmem:[#allocation2 + $0xa8] sm:$0xff] 0.0
          %328 = vst [vmem:[#allocation2 + $0xb0] sm:$0xff] 0.0
          %329 = vst [vmem:[#allocation2 + $0xb8] sm:$0xff] 0.0
          %330 = vst [vmem:[#allocation2 + $0xc0] sm:$0xff] 0.0
          %331 = vst [vmem:[#allocation2 + $0xc8] sm:$0xff] 0.0
          %332 = vst [vmem:[#allocation2 + $0xd0] sm:$0xff] 0.0
          %333 = vst [vmem:[#allocation2 + $0xd8] sm:$0xff] 0.0
          %334 = vst [vmem:[#allocation2 + $0xe0] sm:$0xff] 0.0
          %335 = vst [vmem:[#allocation2 + $0xe8] sm:$0xff] 0.0
          %336 = vst [vmem:[#allocation2 + $0xf0] sm:$0xff] 0.0
          %337 = vst [vmem:[#allocation2 + $0xf8] sm:$0xff] 0.0
        $region48: #{tpu_custom_call.1} parent=31 // pred_fallthru
          _
        %v338 = vld [vmem:[#allocation2] sm:$0xff]
        %v339 = vld [vmem:[#allocation2 + $0x8] sm:$0xff]
        %v340 = vld [vmem:[#allocation2 + $0x10] sm:$0xff]
        %v341 = vld [vmem:[#allocation2 + $0x18] sm:$0xff]
        %v342 = vld [vmem:[#allocation2 + $0x20] sm:$0xff]
        %v343 = vld [vmem:[#allocation2 + $0x28] sm:$0xff]
        %v344 = vld [vmem:[#allocation2 + $0x30] sm:$0xff]
        %v345 = vld [vmem:[#allocation2 + $0x38] sm:$0xff]
        %v346 = vld [vmem:[#allocation2 + $0x40] sm:$0xff]
        %v347 = vld [vmem:[#allocation2 + $0x48] sm:$0xff]
        %v348 = vld [vmem:[#allocation2 + $0x50] sm:$0xff]
        %v349 = vld [vmem:[#allocation2 + $0x58] sm:$0xff]
        %v350 = vld [vmem:[#allocation2 + $0x60] sm:$0xff]
        %v351 = vld [vmem:[#allocation2 + $0x68] sm:$0xff]
        %v352 = vld [vmem:[#allocation2 + $0x70] sm:$0xff]
        %v353 = vld [vmem:[#allocation2 + $0x78] sm:$0xff]
        %v354 = vld [vmem:[#allocation2 + $0x80] sm:$0xff]
        %v355 = vld [vmem:[#allocation2 + $0x88] sm:$0xff]
        %v356 = vld [vmem:[#allocation2 + $0x90] sm:$0xff]
        %v357 = vld [vmem:[#allocation2 + $0x98] sm:$0xff]
        %v358 = vld [vmem:[#allocation2 + $0xa0] sm:$0xff]
        %v359 = vld [vmem:[#allocation2 + $0xa8] sm:$0xff]
        %v360 = vld [vmem:[#allocation2 + $0xb0] sm:$0xff]
        %v361 = vld [vmem:[#allocation2 + $0xb8] sm:$0xff]
        %v362 = vld [vmem:[#allocation2 + $0xc0] sm:$0xff]
        %v363 = vld [vmem:[#allocation2 + $0xc8] sm:$0xff]
        %v364 = vld [vmem:[#allocation2 + $0xd0] sm:$0xff]
        %v365 = vld [vmem:[#allocation2 + $0xd8] sm:$0xff]
        %v366 = vld [vmem:[#allocation2 + $0xe0] sm:$0xff]
        %v367 = vld [vmem:[#allocation2 + $0xe8] sm:$0xff]
        %v368 = vld [vmem:[#allocation2 + $0xf0] sm:$0xff]
        %v369 = vld [vmem:[#allocation2 + $0xf8] sm:$0xff]
        %v370 = vld [vmem:[%s244] sm:$0xff]
        %v371 = vld [vmem:[%s244 + $0x8] sm:$0xff]
        %v372 = vld [vmem:[%s244 + $0x10] sm:$0xff]
        %v373 = vld [vmem:[%s244 + $0x18] sm:$0xff]
        %v374 = vld [vmem:[%s244 + $0x20] sm:$0xff]
        %v375 = vld [vmem:[%s244 + $0x28] sm:$0xff]
        %v376 = vld [vmem:[%s244 + $0x30] sm:$0xff]
        %v377 = vld [vmem:[%s244 + $0x38] sm:$0xff]
        %v378 = vld [vmem:[%s244 + $0x40] sm:$0xff]
        %v379 = vld [vmem:[%s244 + $0x48] sm:$0xff]
        %v380 = vld [vmem:[%s244 + $0x50] sm:$0xff]
        %v381 = vld [vmem:[%s244 + $0x58] sm:$0xff]
        %v382 = vld [vmem:[%s244 + $0x60] sm:$0xff]
        %v383 = vld [vmem:[%s244 + $0x68] sm:$0xff]
        %v384 = vld [vmem:[%s244 + $0x70] sm:$0xff]
        %v385 = vld [vmem:[%s244 + $0x78] sm:$0xff]
        %v386 = vld [vmem:[%s253] sm:$0xff]
        %v387 = vld [vmem:[%s253 + $0x8] sm:$0xff]
        %v388 = vld [vmem:[%s253 + $0x10] sm:$0xff]
        %v389 = vld [vmem:[%s253 + $0x18] sm:$0xff]
        %v390 = vld [vmem:[%s253 + $0x20] sm:$0xff]
        %v391 = vld [vmem:[%s253 + $0x28] sm:$0xff]
        %v392 = vld [vmem:[%s253 + $0x30] sm:$0xff]
        %v393 = vld [vmem:[%s253 + $0x38] sm:$0xff]
        %v394 = vld [vmem:[%s253 + $0x40] sm:$0xff]
        %v395 = vld [vmem:[%s253 + $0x48] sm:$0xff]
        %v396 = vld [vmem:[%s253 + $0x50] sm:$0xff]
        %v397 = vld [vmem:[%s253 + $0x58] sm:$0xff]
        %v398 = vld [vmem:[%s253 + $0x60] sm:$0xff]
        %v399 = vld [vmem:[%s253 + $0x68] sm:$0xff]
        %v400 = vld [vmem:[%s253 + $0x70] sm:$0xff]
        %v401 = vld [vmem:[%s253 + $0x78] sm:$0xff]
        %v402 = vld [vmem:[%s253 + $0x80] sm:$0xff]
        %v403 = vld [vmem:[%s253 + $0x88] sm:$0xff]
        %v404 = vld [vmem:[%s253 + $0x90] sm:$0xff]
        %v405 = vld [vmem:[%s253 + $0x98] sm:$0xff]
        %v406 = vld [vmem:[%s253 + $0xa0] sm:$0xff]
        %v407 = vld [vmem:[%s253 + $0xa8] sm:$0xff]
        %v408 = vld [vmem:[%s253 + $0xb0] sm:$0xff]
        %v409 = vld [vmem:[%s253 + $0xb8] sm:$0xff]
        %v410 = vld [vmem:[%s253 + $0xc0] sm:$0xff]
        %v411 = vld [vmem:[%s253 + $0xc8] sm:$0xff]
        %v412 = vld [vmem:[%s253 + $0xd0] sm:$0xff]
        %v413 = vld [vmem:[%s253 + $0xd8] sm:$0xff]
        %v414 = vld [vmem:[%s253 + $0xe0] sm:$0xff]
        %v415 = vld [vmem:[%s253 + $0xe8] sm:$0xff]
        %v416 = vld [vmem:[%s253 + $0xf0] sm:$0xff]
        %v417 = vld [vmem:[%s253 + $0xf8] sm:$0xff]
        %v434 = vunpack.c.l.b16 %v370
        %v435 = vunpack.c.h.b16 %v370
        %v436 = vunpack.c.l.b16 %v371
        %v437 = vunpack.c.h.b16 %v371
        %v438 = vunpack.c.l.b16 %v372
        %v439 = vunpack.c.h.b16 %v372
        %v440 = vunpack.c.l.b16 %v373
        %v441 = vunpack.c.h.b16 %v373
        %v442 = vunpack.c.l.b16 %v374
        %v443 = vunpack.c.h.b16 %v374
        %v444 = vunpack.c.l.b16 %v375
        %v445 = vunpack.c.h.b16 %v375
        %v446 = vunpack.c.l.b16 %v376
        %v447 = vunpack.c.h.b16 %v376
        %v448 = vunpack.c.l.b16 %v377
        %v449 = vunpack.c.h.b16 %v377
        %v450 = vunpack.c.l.b16 %v378
        %v451 = vunpack.c.h.b16 %v378
        %v452 = vunpack.c.l.b16 %v379
        %v453 = vunpack.c.h.b16 %v379
        %v454 = vunpack.c.l.b16 %v380
        %v455 = vunpack.c.h.b16 %v380
        %v456 = vunpack.c.l.b16 %v381
        %v457 = vunpack.c.h.b16 %v381
        %v458 = vunpack.c.l.b16 %v382
        %v459 = vunpack.c.h.b16 %v382
        %v460 = vunpack.c.l.b16 %v383
        %v461 = vunpack.c.h.b16 %v383
        %v462 = vunpack.c.l.b16 %v384
        %v463 = vunpack.c.h.b16 %v384
        %v464 = vunpack.c.l.b16 %v385
        %v465 = vunpack.c.h.b16 %v385
        %v466 = vpack.c.b16 %v436, %v434
        %v467 = vpack.c.b16 %v437, %v435
        %v468 = vpack.c.b16 %v440, %v438
        %v469 = vpack.c.b16 %v441, %v439
        %v470 = vpack.c.b16 %v444, %v442
        %v471 = vpack.c.b16 %v445, %v443
        %v472 = vpack.c.b16 %v448, %v446
        %v473 = vpack.c.b16 %v449, %v447
        %v474 = vpack.c.b16 %v452, %v450
        %v475 = vpack.c.b16 %v453, %v451
        %v476 = vpack.c.b16 %v456, %v454
        %v477 = vpack.c.b16 %v457, %v455
        %v478 = vpack.c.b16 %v460, %v458
        %v479 = vpack.c.b16 %v461, %v459
        %v480 = vpack.c.b16 %v464, %v462
        %v481 = vpack.c.b16 %v465, %v463
        %v530 = vunpack.c.l.b16 %v386
        %v531 = vunpack.c.h.b16 %v386
        %v532 = vunpack.c.l.b16 %v387
        %v533 = vunpack.c.h.b16 %v387
        %v534 = vunpack.c.l.b16 %v388
        %v535 = vunpack.c.h.b16 %v388
        %v536 = vunpack.c.l.b16 %v389
        %v537 = vunpack.c.h.b16 %v389
        %v538 = vunpack.c.l.b16 %v390
        %v539 = vunpack.c.h.b16 %v390
        %v540 = vunpack.c.l.b16 %v391
        %v541 = vunpack.c.h.b16 %v391
        %v542 = vunpack.c.l.b16 %v392
        %v543 = vunpack.c.h.b16 %v392
        %v544 = vunpack.c.l.b16 %v393
        %v545 = vunpack.c.h.b16 %v393
        %v546 = vunpack.c.l.b16 %v394
        %v547 = vunpack.c.h.b16 %v394
        %v548 = vunpack.c.l.b16 %v395
        %v549 = vunpack.c.h.b16 %v395
        %v550 = vunpack.c.l.b16 %v396
        %v551 = vunpack.c.h.b16 %v396
        %v552 = vunpack.c.l.b16 %v397
        %v553 = vunpack.c.h.b16 %v397
        %v554 = vunpack.c.l.b16 %v398
        %v555 = vunpack.c.h.b16 %v398
        %v556 = vunpack.c.l.b16 %v399
        %v557 = vunpack.c.h.b16 %v399
        %v558 = vunpack.c.l.b16 %v400
        %v559 = vunpack.c.h.b16 %v400
        %v560 = vunpack.c.l.b16 %v401
        %v561 = vunpack.c.h.b16 %v401
        %v562 = vunpack.c.l.b16 %v402
        %v563 = vunpack.c.h.b16 %v402
        %v564 = vunpack.c.l.b16 %v403
        %v565 = vunpack.c.h.b16 %v403
        %v566 = vunpack.c.l.b16 %v404
        %v567 = vunpack.c.h.b16 %v404
        %v568 = vunpack.c.l.b16 %v405
        %v569 = vunpack.c.h.b16 %v405
        %v570 = vunpack.c.l.b16 %v406
        %v571 = vunpack.c.h.b16 %v406
        %v572 = vunpack.c.l.b16 %v407
        %v573 = vunpack.c.h.b16 %v407
        %v574 = vunpack.c.l.b16 %v408
        %v575 = vunpack.c.h.b16 %v408
        %v576 = vunpack.c.l.b16 %v409
        %v577 = vunpack.c.h.b16 %v409
        %v578 = vunpack.c.l.b16 %v410
        %v579 = vunpack.c.h.b16 %v410
        %v580 = vunpack.c.l.b16 %v411
        %v581 = vunpack.c.h.b16 %v411
        %v582 = vunpack.c.l.b16 %v412
        %v583 = vunpack.c.h.b16 %v412
        %v584 = vunpack.c.l.b16 %v413
        %v585 = vunpack.c.h.b16 %v413
        %v586 = vunpack.c.l.b16 %v414
        %v587 = vunpack.c.h.b16 %v414
        %v588 = vunpack.c.l.b16 %v415
        %v589 = vunpack.c.h.b16 %v415
        %v590 = vunpack.c.l.b16 %v416
        %v591 = vunpack.c.h.b16 %v416
        %v592 = vunpack.c.l.b16 %v417
        %v593 = vunpack.c.h.b16 %v417
        %v594 = vpack.c.b16 %v532, %v530
        %v595 = vpack.c.b16 %v533, %v531
        %v596 = vpack.c.b16 %v536, %v534
        %v597 = vpack.c.b16 %v537, %v535
        %v598 = vpack.c.b16 %v540, %v538
        %v599 = vpack.c.b16 %v541, %v539
        %v600 = vpack.c.b16 %v544, %v542
        %v601 = vpack.c.b16 %v545, %v543
        %v602 = vpack.c.b16 %v548, %v546
        %v603 = vpack.c.b16 %v549, %v547
        %v604 = vpack.c.b16 %v552, %v550
        %v605 = vpack.c.b16 %v553, %v551
        %v606 = vpack.c.b16 %v556, %v554
        %v607 = vpack.c.b16 %v557, %v555
        %v608 = vpack.c.b16 %v560, %v558
        %v609 = vpack.c.b16 %v561, %v559
        %v610 = vpack.c.b16 %v564, %v562
        %v611 = vpack.c.b16 %v565, %v563
        %v612 = vpack.c.b16 %v568, %v566
        %v613 = vpack.c.b16 %v569, %v567
        %v614 = vpack.c.b16 %v572, %v570
        %v615 = vpack.c.b16 %v573, %v571
        %v616 = vpack.c.b16 %v576, %v574
        %v617 = vpack.c.b16 %v577, %v575
        %v618 = vpack.c.b16 %v580, %v578
        %v619 = vpack.c.b16 %v581, %v579
        %v620 = vpack.c.b16 %v584, %v582
        %v621 = vpack.c.b16 %v585, %v583
        %v622 = vpack.c.b16 %v588, %v586
        %v623 = vpack.c.b16 %v589, %v587
        %v624 = vpack.c.b16 %v592, %v590
        %v625 = vpack.c.b16 %v593, %v591
        %658 = vmatprep.subr.bf16.mxu0 %v609
        %659 = vmatpush1.bf16.msra.mxu0 %v608
        %660 = vmatprep.subr.bf16.mxu0 %v607
        %661 = vmatpush1.bf16.msra.mxu0 %v606
        %662 = vmatprep.subr.bf16.mxu0 %v605
        %663 = vmatpush1.bf16.msra.mxu0 %v604
        %664 = vmatprep.subr.bf16.mxu0 %v603
        %665 = vmatpush1.bf16.msra.mxu0 %v602
        %666 = vmatprep.subr.bf16.mxu0 %v601
        %667 = vmatpush1.bf16.msra.mxu0 %v600
        %668 = vmatprep.subr.bf16.mxu0 %v599
        %669 = vmatpush1.bf16.msra.mxu0 %v598
        %670 = vmatprep.subr.bf16.mxu0 %v597
        %671 = vmatpush1.bf16.msra.mxu0 %v596
        %672 = vmatprep.subr.bf16.mxu0 %v595
        %673 = vmatpush1.bf16.msra.mxu0 %v594
        %674 = vmatprep.subr.bf16.mxu0 %v625
        %675 = vmatpush2.bf16.msra.mxu0 %v624
        %676 = vmatprep.subr.bf16.mxu0 %v623
        %677 = vmatpush2.bf16.msra.mxu0 %v622
        %678 = vmatprep.subr.bf16.mxu0 %v621
        %679 = vmatpush2.bf16.msra.mxu0 %v620
        %680 = vmatprep.subr.bf16.mxu0 %v619
        %681 = vmatpush2.bf16.msra.mxu0 %v618
        %682 = vmatprep.subr.bf16.mxu0 %v617
        %683 = vmatpush2.bf16.msra.mxu0 %v616
        %684 = vmatprep.subr.bf16.mxu0 %v615
        %685 = vmatpush2.bf16.msra.mxu0 %v614
        %686 = vmatprep.subr.bf16.mxu0 %v613
        %687 = vmatpush2.bf16.msra.mxu0 %v612
        %688 = vmatprep.subr.bf16.mxu0 %v611
        %689 = vmatpush2.bf16.msra.mxu0 %v610
        %690 = vmatprep.mubr.bf16.mxu0 %v467
        %691 = vmatmul.mubr.bf16.gmra.mxu0 %v466
        %v692 = vpop.f32.mrf.mxu0
        %v693 = vadd.f32 0.0, %v692
        %v694 = vpop.f32.mrf.mxu0
        %v695 = vadd.f32 0.0, %v694
        %v696 = vpop.f32.mrf.mxu0
        %v697 = vadd.f32 0.0, %v696
        %v698 = vpop.f32.mrf.mxu0
        %v699 = vadd.f32 0.0, %v698
        %700 = vmatprep.mubr.bf16.mxu0 %v469
        %701 = vmatmul.mubr.bf16.gmra.mxu0 %v468
        %v702 = vpop.f32.mrf.mxu0
        %v703 = vadd.f32 0.0, %v702
        %v704 = vpop.f32.mrf.mxu0
        %v705 = vadd.f32 0.0, %v704
        %v706 = vpop.f32.mrf.mxu0
        %v707 = vadd.f32 0.0, %v706
        %v708 = vpop.f32.mrf.mxu0
        %v709 = vadd.f32 0.0, %v708
        %710 = vmatprep.mubr.bf16.mxu0 %v471
        %711 = vmatmul.mubr.bf16.gmra.mxu0 %v470
        %v712 = vpop.f32.mrf.mxu0
        %v713 = vadd.f32 0.0, %v712
        %v714 = vpop.f32.mrf.mxu0
        %v715 = vadd.f32 0.0, %v714
        %v716 = vpop.f32.mrf.mxu0
        %v717 = vadd.f32 0.0, %v716
        %v718 = vpop.f32.mrf.mxu0
        %v719 = vadd.f32 0.0, %v718
        %720 = vmatprep.mubr.bf16.mxu0 %v473
        %721 = vmatmul.mubr.bf16.gmra.mxu0 %v472
        %v722 = vpop.f32.mrf.mxu0
        %v723 = vadd.f32 0.0, %v722
        %v724 = vpop.f32.mrf.mxu0
        %v725 = vadd.f32 0.0, %v724
        %v726 = vpop.f32.mrf.mxu0
        %v727 = vadd.f32 0.0, %v726
        %v728 = vpop.f32.mrf.mxu0
        %v729 = vadd.f32 0.0, %v728
        %730 = vmatprep.mubr.bf16.mxu0 %v475
        %731 = vmatmul.mubr.bf16.gmra.mxu0 %v474
        %v732 = vpop.f32.mrf.mxu0
        %v733 = vadd.f32 0.0, %v732
        %v734 = vpop.f32.mrf.mxu0
        %v735 = vadd.f32 0.0, %v734
        %v736 = vpop.f32.mrf.mxu0
        %v737 = vadd.f32 0.0, %v736
        %v738 = vpop.f32.mrf.mxu0
        %v739 = vadd.f32 0.0, %v738
        %740 = vmatprep.mubr.bf16.mxu0 %v477
        %741 = vmatmul.mubr.bf16.gmra.mxu0 %v476
        %v742 = vpop.f32.mrf.mxu0
        %v743 = vadd.f32 0.0, %v742
        %v744 = vpop.f32.mrf.mxu0
        %v745 = vadd.f32 0.0, %v744
        %v746 = vpop.f32.mrf.mxu0
        %v747 = vadd.f32 0.0, %v746
        %v748 = vpop.f32.mrf.mxu0
        %v749 = vadd.f32 0.0, %v748
        %750 = vmatprep.mubr.bf16.mxu0 %v479
        %751 = vmatmul.mubr.bf16.gmra.mxu0 %v478
        %v752 = vpop.f32.mrf.mxu0
        %v753 = vadd.f32 0.0, %v752
        %v754 = vpop.f32.mrf.mxu0
        %v755 = vadd.f32 0.0, %v754
        %v756 = vpop.f32.mrf.mxu0
        %v757 = vadd.f32 0.0, %v756
        %v758 = vpop.f32.mrf.mxu0
        %v759 = vadd.f32 0.0, %v758
        %760 = vmatprep.mubr.bf16.mxu0 %v481
        %761 = vmatmul.mubr.bf16.gmra.mxu0 %v480
        %v762 = vpop.f32.mrf.mxu0
        %v763 = vadd.f32 0.0, %v762
        %v764 = vpop.f32.mrf.mxu0
        %v765 = vadd.f32 0.0, %v764
        %v766 = vpop.f32.mrf.mxu0
        %v767 = vadd.f32 0.0, %v766
        %v768 = vpop.f32.mrf.mxu0
        %v769 = vadd.f32 0.0, %v768
        %770 = vdwg.mxu0
        %v771 = vadd.f32 %v338, %v693
        %v772 = vadd.f32 %v339, %v695
        %v773 = vadd.f32 %v340, %v697
        %v774 = vadd.f32 %v341, %v699
        %v775 = vadd.f32 %v342, %v703
        %v776 = vadd.f32 %v343, %v705
        %v777 = vadd.f32 %v344, %v707
        %v778 = vadd.f32 %v345, %v709
        %v779 = vadd.f32 %v346, %v713
        %v780 = vadd.f32 %v347, %v715
        %v781 = vadd.f32 %v348, %v717
        %v782 = vadd.f32 %v349, %v719
        %v783 = vadd.f32 %v350, %v723
        %v784 = vadd.f32 %v351, %v725
        %v785 = vadd.f32 %v352, %v727
        %v786 = vadd.f32 %v353, %v729
        %v787 = vadd.f32 %v354, %v733
        %v788 = vadd.f32 %v355, %v735
        %v789 = vadd.f32 %v356, %v737
        %v790 = vadd.f32 %v357, %v739
        %v791 = vadd.f32 %v358, %v743
        %v792 = vadd.f32 %v359, %v745
        %v793 = vadd.f32 %v360, %v747
        %v794 = vadd.f32 %v361, %v749
        %v795 = vadd.f32 %v362, %v753
        %v796 = vadd.f32 %v363, %v755
        %v797 = vadd.f32 %v364, %v757
        %v798 = vadd.f32 %v365, %v759
        %v799 = vadd.f32 %v366, %v763
        %v800 = vadd.f32 %v367, %v765
        %v801 = vadd.f32 %v368, %v767
        %v802 = vadd.f32 %v369, %v769
        %803 = vst [vmem:[#allocation2] sm:$0xff] %v771
        %804 = vst [vmem:[#allocation2 + $0x8] sm:$0xff] %v772
        %805 = vst [vmem:[#allocation2 + $0x10] sm:$0xff] %v773
        %806 = vst [vmem:[#allocation2 + $0x18] sm:$0xff] %v774
        %807 = vst [vmem:[#allocation2 + $0x20] sm:$0xff] %v775
        %808 = vst [vmem:[#allocation2 + $0x28] sm:$0xff] %v776
        %809 = vst [vmem:[#allocation2 + $0x30] sm:$0xff] %v777
        %810 = vst [vmem:[#allocation2 + $0x38] sm:$0xff] %v778
        %811 = vst [vmem:[#allocation2 + $0x40] sm:$0xff] %v779
        %812 = vst [vmem:[#allocation2 + $0x48] sm:$0xff] %v780
        %813 = vst [vmem:[#allocation2 + $0x50] sm:$0xff] %v781
        %814 = vst [vmem:[#allocation2 + $0x58] sm:$0xff] %v782
        %815 = vst [vmem:[#allocation2 + $0x60] sm:$0xff] %v783
        %816 = vst [vmem:[#allocation2 + $0x68] sm:$0xff] %v784
        %817 = vst [vmem:[#allocation2 + $0x70] sm:$0xff] %v785
        %818 = vst [vmem:[#allocation2 + $0x78] sm:$0xff] %v786
        %819 = vst [vmem:[#allocation2 + $0x80] sm:$0xff] %v787
        %820 = vst [vmem:[#allocation2 + $0x88] sm:$0xff] %v788
        %821 = vst [vmem:[#allocation2 + $0x90] sm:$0xff] %v789
        %822 = vst [vmem:[#allocation2 + $0x98] sm:$0xff] %v790
        %823 = vst [vmem:[#allocation2 + $0xa0] sm:$0xff] %v791
        %824 = vst [vmem:[#allocation2 + $0xa8] sm:$0xff] %v792
        %825 = vst [vmem:[#allocation2 + $0xb0] sm:$0xff] %v793
        %826 = vst [vmem:[#allocation2 + $0xb8] sm:$0xff] %v794
        %827 = vst [vmem:[#allocation2 + $0xc0] sm:$0xff] %v795
        %828 = vst [vmem:[#allocation2 + $0xc8] sm:$0xff] %v796
        %829 = vst [vmem:[#allocation2 + $0xd0] sm:$0xff] %v797
        %830 = vst [vmem:[#allocation2 + $0xd8] sm:$0xff] %v798
        %831 = vst [vmem:[#allocation2 + $0xe0] sm:$0xff] %v799
        %832 = vst [vmem:[#allocation2 + $0xe8] sm:$0xff] %v800
        %833 = vst [vmem:[#allocation2 + $0xf0] sm:$0xff] %v801
        %834 = vst [vmem:[#allocation2 + $0xf8] sm:$0xff] %v802
        %p835 = scmp.eq.s32.totalorder %s30, 1
        // Predicated region
        $region49: #{tpu_custom_call.1} parent=31 // pred_check
          %p836 = pneg %p835
        $region50: #{tpu_custom_call.1} parent=31 // pred_check_branch
          %838 = sbr.rel (%p836) target = $region52
        $region51: #{tpu_custom_call.1} parent=31 // pred_region
          %v839 = vld [vmem:[#allocation2] sm:$0xff]
          %v840 = vld [vmem:[#allocation2 + $0x8] sm:$0xff]
          %v841 = vld [vmem:[#allocation2 + $0x10] sm:$0xff]
          %v842 = vld [vmem:[#allocation2 + $0x18] sm:$0xff]
          %v843 = vld [vmem:[#allocation2 + $0x20] sm:$0xff]
          %v844 = vld [vmem:[#allocation2 + $0x28] sm:$0xff]
          %v845 = vld [vmem:[#allocation2 + $0x30] sm:$0xff]
          %v846 = vld [vmem:[#allocation2 + $0x38] sm:$0xff]
          %v847 = vld [vmem:[#allocation2 + $0x40] sm:$0xff]
          %v848 = vld [vmem:[#allocation2 + $0x48] sm:$0xff]
          %v849 = vld [vmem:[#allocation2 + $0x50] sm:$0xff]
          %v850 = vld [vmem:[#allocation2 + $0x58] sm:$0xff]
          %v851 = vld [vmem:[#allocation2 + $0x60] sm:$0xff]
          %v852 = vld [vmem:[#allocation2 + $0x68] sm:$0xff]
          %v853 = vld [vmem:[#allocation2 + $0x70] sm:$0xff]
          %v854 = vld [vmem:[#allocation2 + $0x78] sm:$0xff]
          %v855 = vld [vmem:[#allocation2 + $0x80] sm:$0xff]
          %v856 = vld [vmem:[#allocation2 + $0x88] sm:$0xff]
          %v857 = vld [vmem:[#allocation2 + $0x90] sm:$0xff]
          %v858 = vld [vmem:[#allocation2 + $0x98] sm:$0xff]
          %v859 = vld [vmem:[#allocation2 + $0xa0] sm:$0xff]
          %v860 = vld [vmem:[#allocation2 + $0xa8] sm:$0xff]
          %v861 = vld [vmem:[#allocation2 + $0xb0] sm:$0xff]
          %v862 = vld [vmem:[#allocation2 + $0xb8] sm:$0xff]
          %v863 = vld [vmem:[#allocation2 + $0xc0] sm:$0xff]
          %v864 = vld [vmem:[#allocation2 + $0xc8] sm:$0xff]
          %v865 = vld [vmem:[#allocation2 + $0xd0] sm:$0xff]
          %v866 = vld [vmem:[#allocation2 + $0xd8] sm:$0xff]
          %v867 = vld [vmem:[#allocation2 + $0xe0] sm:$0xff]
          %v868 = vld [vmem:[#allocation2 + $0xe8] sm:$0xff]
          %v869 = vld [vmem:[#allocation2 + $0xf0] sm:$0xff]
          %v870 = vld [vmem:[#allocation2 + $0xf8] sm:$0xff]
          %v871 = vld [vmem:[%s262] sm:$0x3]
          %v873 = vlaneseq
          %v874 = vshrl.u32 %v873, 7
          %v875 = vsub.s32 0, %v874
          %v876 = vrot.slane %v871, %v875
          %v877 = vlaneseq
          %v878 = vshrl.u32 %v877, 7
          %v879 = vsub.s32 1, %v878
          %v880 = vrot.slane %v871, %v879
          %v883 = vadd.f32 %v839, %v876
          %v884 = vadd.f32 %v840, %v880
          %v885 = vadd.f32 %v841, %v876
          %v886 = vadd.f32 %v842, %v880
          %v887 = vadd.f32 %v843, %v876
          %v888 = vadd.f32 %v844, %v880
          %v889 = vadd.f32 %v845, %v876
          %v890 = vadd.f32 %v846, %v880
          %v891 = vadd.f32 %v847, %v876
          %v892 = vadd.f32 %v848, %v880
          %v893 = vadd.f32 %v849, %v876
          %v894 = vadd.f32 %v850, %v880
          %v895 = vadd.f32 %v851, %v876
          %v896 = vadd.f32 %v852, %v880
          %v897 = vadd.f32 %v853, %v876
          %v898 = vadd.f32 %v854, %v880
          %v899 = vadd.f32 %v855, %v876
          %v900 = vadd.f32 %v856, %v880
          %v901 = vadd.f32 %v857, %v876
          %v902 = vadd.f32 %v858, %v880
          %v903 = vadd.f32 %v859, %v876
          %v904 = vadd.f32 %v860, %v880
          %v905 = vadd.f32 %v861, %v876
          %v906 = vadd.f32 %v862, %v880
          %v907 = vadd.f32 %v863, %v876
          %v908 = vadd.f32 %v864, %v880
          %v909 = vadd.f32 %v865, %v876
          %v910 = vadd.f32 %v866, %v880
          %v911 = vadd.f32 %v867, %v876
          %v912 = vadd.f32 %v868, %v880
          %v913 = vadd.f32 %v869, %v876
          %v914 = vadd.f32 %v870, %v880
          %915 = vst [vmem:[%s294] sm:$0xff] %v883
          %916 = vst [vmem:[%s294 + $0x8] sm:$0xff] %v884
          %917 = vst [vmem:[%s294 + $0x10] sm:$0xff] %v885
          %918 = vst [vmem:[%s294 + $0x18] sm:$0xff] %v886
          %919 = vst [vmem:[%s294 + $0x20] sm:$0xff] %v887
          %920 = vst [vmem:[%s294 + $0x28] sm:$0xff] %v888
          %921 = vst [vmem:[%s294 + $0x30] sm:$0xff] %v889
          %922 = vst [vmem:[%s294 + $0x38] sm:$0xff] %v890
          %923 = vst [vmem:[%s294 + $0x40] sm:$0xff] %v891
          %924 = vst [vmem:[%s294 + $0x48] sm:$0xff] %v892
          %925 = vst [vmem:[%s294 + $0x50] sm:$0xff] %v893
          %926 = vst [vmem:[%s294 + $0x58] sm:$0xff] %v894
          %927 = vst [vmem:[%s294 + $0x60] sm:$0xff] %v895
          %928 = vst [vmem:[%s294 + $0x68] sm:$0xff] %v896
          %929 = vst [vmem:[%s294 + $0x70] sm:$0xff] %v897
          %930 = vst [vmem:[%s294 + $0x78] sm:$0xff] %v898
          %931 = vst [vmem:[%s294 + $0x80] sm:$0xff] %v899
          %932 = vst [vmem:[%s294 + $0x88] sm:$0xff] %v900
          %933 = vst [vmem:[%s294 + $0x90] sm:$0xff] %v901
          %934 = vst [vmem:[%s294 + $0x98] sm:$0xff] %v902
          %935 = vst [vmem:[%s294 + $0xa0] sm:$0xff] %v903
          %936 = vst [vmem:[%s294 + $0xa8] sm:$0xff] %v904
          %937 = vst [vmem:[%s294 + $0xb0] sm:$0xff] %v905
          %938 = vst [vmem:[%s294 + $0xb8] sm:$0xff] %v906
          %939 = vst [vmem:[%s294 + $0xc0] sm:$0xff] %v907
          %940 = vst [vmem:[%s294 + $0xc8] sm:$0xff] %v908
          %941 = vst [vmem:[%s294 + $0xd0] sm:$0xff] %v909
          %942 = vst [vmem:[%s294 + $0xd8] sm:$0xff] %v910
          %943 = vst [vmem:[%s294 + $0xe0] sm:$0xff] %v911
          %944 = vst [vmem:[%s294 + $0xe8] sm:$0xff] %v912
          %945 = vst [vmem:[%s294 + $0xf0] sm:$0xff] %v913
          %946 = vst [vmem:[%s294 + $0xf8] sm:$0xff] %v914
        $region52: #{tpu_custom_call.1} parent=31 // pred_fallthru
          _
        %s947 = sand.u32 %s134, 1
        %s948 = scalar_lea.sflag [#allocation5], %s947
        %s949 = sand.u32 %s134, 1
        %s950 = smul.addr %s949, 256
        %s951 = scalar_lea.vmem [#allocation9], %s950
        // Predicated region
        $region53: #{tpu_custom_call.1} parent=31 // pred_check
          %p952 = pneg %p144
        $region54: #{tpu_custom_call.1} parent=31 // pred_check_branch
          %954 = sbr.rel (%p952) target = $region56
        $region55: #{tpu_custom_call.1} parent=31 // pred_region
          %s955 = smul.u32 16, %s28
          %s956 = smul.u32 2, %s29
          %s958 = ssub.s32 4096, 4096
          %959 = vsyncadd %s948, %s958
          %s960 = smul.addr %s955, 4
          %s961 = sadd.s32 %s956, %s960
          %s962 = smul.addr %s961, 128
          %s963 = scalar_lea.hbm %s3, %s962
          %s964 = sshll.u32 %s951, 4
          %s965 = int_to_ptr.vmem [resolvable:$true] %s964
          %970 = dma.vmem_to_hbm [thread:$0]  %s965, 4096, %s963, %s948, 256, 512, 16
        $region56: #{tpu_custom_call.1} parent=31 // pred_fallthru
          _
      $region32: #{tpu_custom_call.1} parent=5 // pred_fallthru
        _
      %p971 = scmp.le.s32.totalorder 2, %s18
      // Predicated region
      $region57: #{tpu_custom_call.1} parent=5 // pred_check
        %p972 = pneg %p971
      $region58: #{tpu_custom_call.1} parent=5 // pred_check_branch
        %974 = sbr.rel (%p972) target = $region60
      $region59: #{tpu_custom_call.1} parent=5 // pred_region
        %s975 = ssub.s32 %s18, 2
        // Predicated region
        $region61: #{tpu_custom_call.1} parent=59 // pred_check
          %p976 = pneg %p150
        $region62: #{tpu_custom_call.1} parent=59 // pred_check_branch
          %978 = sbr.rel (%p976) target = $region64
        $region63: #{tpu_custom_call.1} parent=59 // pred_region
          %s979 = sand.u32 %s135, 1
          %s980 = scalar_lea.sflag [#allocation5], %s979
          %s981 = sand.u32 %s135, 1
          %s982 = smul.addr %s981, 256
          %s983 = scalar_lea.vmem [#allocation9], %s982
          %984 = dma.done %s980, 4096
        $region64: #{tpu_custom_call.1} parent=59 // pred_fallthru
          _
      $region60: #{tpu_custom_call.1} parent=5 // pred_fallthru
        _
    $region6: #{tpu_custom_call.1} parent=1 // loop_footer
      %s22 = sadd.s32 1, %s18
    $region7: #{tpu_custom_call.1} parent=1 // loop_footer_branch
      %17 = sbr.rel target = $region3
    $region8: #{tpu_custom_call.1} parent=1 // loop_exit
      _
    %985 = vsyncpa [#allocation4], 1
    %s986 = scalar_lea.sflag [#allocation4], 1
    %987 = vsyncpa %s986, 1
    %988 = vsyncpa [#allocation7], 1
    %s989 = scalar_lea.sflag [#allocation7], 1
    %990 = vsyncpa %s989, 1
    %991 = vsyncpa [#allocation5], 1
    %s992 = scalar_lea.sflag [#allocation5], 1
    %993 = vsyncpa %s992, 1

</llo_original>
